<compile_context>
chip_gen: v5e
topology: v5e:2x2
jax: 0.10.0
libtpu: 0.0.40
codegen_flags: <defaults>
</compile_context>

<pallas_src>
import functools
import math

import jax
import jax.numpy as jnp
from jax.experimental import pallas as pl
from jax.experimental.pallas import tpu as pltpu


@functools.lru_cache(maxsize=None)
def _vmem_limit_bytes():
    # Generation-aware cap: physical VMEM minus ~16 MiB headroom for compiler scratch.
    try:
        cap = pltpu.get_tpu_info().vmem_capacity_bytes
    except Exception:
        cap = 64 * 1024 * 1024
    return int(max(cap - 16 * 1024 * 1024, 32 * 1024 * 1024))


def _cparams(*semantics):
    return pltpu.CompilerParams(
        dimension_semantics=tuple(semantics),
        vmem_limit_bytes=_vmem_limit_bytes(),
    )


def _pick_tile(n, target, align):
    """Largest tile <= target that divides n and is a multiple of `align`, else n (full)."""
    if n <= target:
        return n
    t = (target // align) * align
    while t >= align:
        if n % t == 0:
            return t
        t -= align
    return n


# --------------------------------------------------------------- fused LayerNorm + Linear (full K)
def _ln_linear_kernel(x_ref, g_ref, b_ref, w_ref, bias_ref, o_ref, *, eps):
    x = x_ref[...].astype(jnp.float32)
    mu = jnp.mean(x, axis=-1, keepdims=True)
    xc = x - mu
    var = jnp.mean(xc * xc, axis=-1, keepdims=True)
    xn = (xc * jax.lax.rsqrt(var + eps) * g_ref[...] + b_ref[...]).astype(w_ref.dtype)
    acc = jnp.dot(xn, w_ref[...], preferred_element_type=jnp.float32)
    o_ref[...] = (acc + bias_ref[...]).astype(o_ref.dtype)


def ln_linear_pallas(x, gamma, beta, w, bias=None, *, eps=1e-6, out_dtype=None,
                     tm=256, tn=512):
    M, K = x.shape
    K2, N = w.shape
    assert K == K2
    out_dtype = out_dtype or x.dtype
    tm = _pick_tile(M, tm, 8)
    tn = _pick_tile(N, tn, 128)
    if bias is None:
        bias = jnp.zeros((N,), jnp.float32)
    g2 = gamma.reshape(1, K).astype(jnp.float32)
    b2 = beta.reshape(1, K).astype(jnp.float32)
    bias2 = bias.reshape(1, N).astype(jnp.float32)
    return pl.pallas_call(
        functools.partial(_ln_linear_kernel, eps=eps),
        out_shape=jax.ShapeDtypeStruct((M, N), out_dtype),
        grid_spec=pltpu.PrefetchScalarGridSpec(
            num_scalar_prefetch=0,
            grid=(M // tm, N // tn),
            in_specs=[
                pl.BlockSpec((tm, K), lambda i, j: (i, 0)),
                pl.BlockSpec((1, K), lambda i, j: (0, 0)),
                pl.BlockSpec((1, K), lambda i, j: (0, 0)),
                pl.BlockSpec((K, tn), lambda i, j: (0, j)),
                pl.BlockSpec((1, tn), lambda i, j: (0, j)),
            ],
            out_specs=pl.BlockSpec((tm, tn), lambda i, j: (i, j)),
        ),
        compiler_params=_cparams("parallel", "parallel"),
    )(x, g2, b2, w, bias2)


# --------------------------------------------------- fused LayerNorm + W1 + GEGLU (hcat never in HBM)
def _ln_geglu_kernel(x_ref, g_ref, b_ref, wa_ref, wg_ref, ba_ref, bg_ref, o_ref, *, eps):
    x = x_ref[...].astype(jnp.float32)
    mu = jnp.mean(x, axis=-1, keepdims=True)
    xc = x - mu
    var = jnp.mean(xc * xc, axis=-1, keepdims=True)
    xn = (xc * jax.lax.rsqrt(var + eps) * g_ref[...] + b_ref[...]).astype(wa_ref.dtype)
    a = jnp.dot(xn, wa_ref[...], preferred_element_type=jnp.float32) + ba_ref[...]
    g = jnp.dot(xn, wg_ref[...], preferred_element_type=jnp.float32) + bg_ref[...]
    # TODO(synk): tanh-approximate GELU is used (reference matches); swap to erf if kitsu's GEGLU is exact.
    o_ref[...] = (a * jax.nn.gelu(g, approximate=True)).astype(o_ref.dtype)


def ln_geglu_pallas(x, gamma, beta, w1, b1, *, eps=1e-6, out_dtype=None, tm=256, tn=512):
    M, K = x.shape
    K2, N2 = w1.shape
    assert K == K2 and N2 % 2 == 0
    mid = N2 // 2
    out_dtype = out_dtype or x.dtype
    tm = _pick_tile(M, tm, 8)
    tn = _pick_tile(mid, tn, 128)
    off = mid // tn  # block offset of the gate half inside W1 / b1
    g2 = gamma.reshape(1, K).astype(jnp.float32)
    b2 = beta.reshape(1, K).astype(jnp.float32)
    bias2 = b1.reshape(1, N2).astype(jnp.float32)
    return pl.pallas_call(
        functools.partial(_ln_geglu_kernel, eps=eps),
        out_shape=jax.ShapeDtypeStruct((M, mid), out_dtype),
        grid_spec=pltpu.PrefetchScalarGridSpec(
            num_scalar_prefetch=0,
            grid=(M // tm, mid // tn),
            in_specs=[
                pl.BlockSpec((tm, K), lambda i, j: (i, 0)),
                pl.BlockSpec((1, K), lambda i, j: (0, 0)),
                pl.BlockSpec((1, K), lambda i, j: (0, 0)),
                pl.BlockSpec((K, tn), lambda i, j: (0, j)),            # "a" columns of W1
                pl.BlockSpec((K, tn), lambda i, j: (0, j + off)),      # gate columns of W1
                pl.BlockSpec((1, tn), lambda i, j: (0, j)),
                pl.BlockSpec((1, tn), lambda i, j: (0, j + off)),
            ],
            out_specs=pl.BlockSpec((tm, tn), lambda i, j: (i, j)),
        ),
        compiler_params=_cparams("parallel", "parallel"),
    )(x, g2, b2, w1, w1, bias2, bias2)


# --------------------------------------------------------------- Linear + bias + residual (k-tiled)
def _linear_res_kernel(x_ref, w_ref, bias_ref, res_ref, o_ref, acc_ref):
    kk = pl.program_id(2)

    @pl.when(kk == 0)
    def _():
        acc_ref[...] = jnp.zeros_like(acc_ref)

    acc_ref[...] += jnp.dot(x_ref[...], w_ref[...], preferred_element_type=jnp.float32)

    @pl.when(kk == pl.num_programs(2) - 1)
    def _():
        o_ref[...] = (acc_ref[...] + bias_ref[...]
                      + res_ref[...].astype(jnp.float32)).astype(o_ref.dtype)


def linear_residual_pallas(x, w, bias, residual, *, out_dtype=None, tm=256, tn=512, tk=512):
    M, K = x.shape
    K2, N = w.shape
    assert K == K2 and residual.shape == (M, N)
    out_dtype = out_dtype or residual.dtype
    tm = _pick_tile(M, tm, 8)
    tn = _pick_tile(N, tn, 128)
    tk = _pick_tile(K, tk, 128)
    if bias is None:
        bias = jnp.zeros((N,), jnp.float32)
    bias2 = bias.reshape(1, N).astype(jnp.float32)
    return pl.pallas_call(
        _linear_res_kernel,
        out_shape=jax.ShapeDtypeStruct((M, N), out_dtype),
        grid_spec=pltpu.PrefetchScalarGridSpec(
            num_scalar_prefetch=0,
            grid=(M // tm, N // tn, K // tk),
            in_specs=[
                pl.BlockSpec((tm, tk), lambda i, j, k: (i, k)),
                pl.BlockSpec((tk, tn), lambda i, j, k: (k, j)),
                pl.BlockSpec((1, tn), lambda i, j, k: (0, j)),
                pl.BlockSpec((tm, tn), lambda i, j, k: (i, j)),
            ],
            out_specs=pl.BlockSpec((tm, tn), lambda i, j, k: (i, j)),
            scratch_shapes=[pltpu.VMEM((tm, tn), jnp.float32)],
        ),
        compiler_params=_cparams("parallel", "parallel", "arbitrary"),
    )(x, w, bias2, residual)


# ----------------------------------------------------------------------------- RoPE (fused Q + K)
def _rope_tables(pos, head_dim, scale=10000.0):
    """(T, head_dim) f32 tables.  sin_a is nonzero only on even lanes (-sin), sin_b only on
    odd lanes (+sin); the rotation in-kernel is x*cos + x[i+1]*sin_a + x[i-1]*sin_b."""
    c = head_dim
    inv = 1.0 / (scale ** (jnp.arange(0, c, 2, dtype=jnp.float32) / c))
    ang = pos.astype(jnp.float32)[:, None] * inv[None, :]            # (T, c//2)
    cos_h = jnp.cos(ang)
    sin_h = jnp.sin(ang)
    z = jnp.zeros_like(sin_h)
    cos_t = jnp.stack([cos_h, cos_h], axis=-1).reshape(-1, c)
    sin_a = jnp.stack([-sin_h, z], axis=-1).reshape(-1, c)
    sin_b = jnp.stack([z, sin_h], axis=-1).reshape(-1, c)
    return cos_t, sin_a, sin_b


def _rope_qk_kernel(q_ref, k_ref, cos_ref, sa_ref, sb_ref, qo_ref, ko_ref, *, n_heads, q_scale):
    # Broadcast the (tr, head_dim) tables across heads in VMEM (no HBM blow-up).
    cos = jnp.concatenate([cos_ref[...]] * n_heads, axis=-1)
    sa = jnp.concatenate([sa_ref[...]] * n_heads, axis=-1)
    sb = jnp.concatenate([sb_ref[...]] * n_heads, axis=-1)
    d = cos.shape[-1]

    def rotate(x_ref):
        x = x_ref[...].astype(jnp.float32)
        x_nxt = pltpu.roll(x, shift=d - 1, axis=1)   # x_nxt[i] = x[i+1] (jnp.roll convention)
        x_prv = pltpu.roll(x, shift=1, axis=1)       # x_prv[i] = x[i-1]
        return x * cos + x_nxt * sa + x_prv * sb     # cross-head wrap is killed by sa/sb parity zeros

    qo_ref[...] = (rotate(q_ref) * q_scale).astype(qo_ref.dtype)   # fold 1/sqrt(head_dim) into q
    ko_ref[...] = rotate(k_ref).astype(ko_ref.dtype)


def rope_qk_pallas(q, k, cos_t, sin_a, sin_b, *, q_scale=1.0, row_tile=256):
    T, D = q.shape
    c = cos_t.shape[-1]
    h = D // c
    tr = _pick_tile(T, row_tile, 8)
    qk_spec = pl.BlockSpec((tr, D), lambda i: (i, 0))
    tbl_spec = pl.BlockSpec((tr, c), lambda i: (i, 0))
    return pl.pallas_call(
        functools.partial(_rope_qk_kernel, n_heads=h, q_scale=q_scale),
        out_shape=(jax.ShapeDtypeStruct((T, D), q.dtype),
                   jax.ShapeDtypeStruct((T, D), k.dtype)),
        grid_spec=pltpu.PrefetchScalarGridSpec(
            num_scalar_prefetch=0,
            grid=(T // tr,),
            in_specs=[qk_spec, qk_spec, tbl_spec, tbl_spec, tbl_spec],
            out_specs=[qk_spec, qk_spec],
        ),
        compiler_params=_cparams("parallel"),
    )(q, k, cos_t, sin_a, sin_b)


# ----------------------------------------------------- Flash attention (unpadded, flattened layout)
def _flash_attn_kernel(kvs_ref, kvc_ref, q_ref, k_ref, v_ref, sq_ref, sk_ref,
                       o_ref, m_sc, l_sc, acc_sc, *, head_dim, hp, q_tile, kv_tile, causal):
    qi = pl.program_id(1)
    ki = pl.program_id(2)
    c = head_dim

    @pl.when(ki == 0)
    def _():
        m_sc[...] = jnp.full_like(m_sc, -jnp.inf)
        l_sc[...] = jnp.zeros_like(l_sc)
        acc_sc[...] = jnp.zeros_like(acc_sc)

    # Only kv blocks inside this q-block's segment/causal range do any work.
    @pl.when(ki < kvc_ref[qi])
    def _():
        mask = sq_ref[...] == sk_ref[...]                           # (tq, tk)
        if causal:
            kb = kvs_ref[qi] + ki                                   # actual kv block index
            q_idx = qi * q_tile + jax.lax.broadcasted_iota(jnp.int32, (q_tile, kv_tile), 0)
            k_idx = kb * kv_tile + jax.lax.broadcasted_iota(jnp.int32, (q_tile, kv_tile), 1)
            mask = jnp.logical_and(mask, q_idx >= k_idx)
        neg = jnp.float32(-1e30)

        for hd in range(hp):                                        # static unroll over heads in block
            cs = slice(hd * c, (hd + 1) * c)
            ms = slice(hd, hd + 1)
            s = jnp.einsum('qd,kd->qk', q_ref[:, cs], k_ref[:, cs],
                           preferred_element_type=jnp.float32)
            s = jnp.where(mask, s, neg)
            m_prev = m_sc[:, ms]
            m_new = jnp.maximum(m_prev, jnp.max(s, axis=-1, keepdims=True))
            alpha = jnp.exp(m_prev - m_new)
            # NOTE: masked lanes give exp(-1e30 - m_new) == 0; every query row always has at
            # least one un-masked key (itself), so no extra where() is needed around exp().
            p = jnp.exp(s - m_new)
            l_sc[:, ms] = alpha * l_sc[:, ms] + jnp.sum(p, axis=-1, keepdims=True)
            acc_sc[:, cs] = alpha * acc_sc[:, cs] + jnp.dot(
                p.astype(v_ref.dtype), v_ref[:, cs], preferred_element_type=jnp.float32)
            m_sc[:, ms] = m_new

    @pl.when(ki == pl.num_programs(2) - 1)
    def _():
        inv = 1.0 / l_sc[...]                                       # (tq, hp)
        for hd in range(hp):
            cs = slice(hd * c, (hd + 1) * c)
            o_ref[:, cs] = (acc_sc[:, cs] * inv[:, hd:hd + 1]).astype(o_ref.dtype)


def flash_attention_pallas(q, k, v, seg_q, seg_k, boundaries, *, head_dim, causal=False,
                           out_dtype=None, q_tile=256, kv_tile=256):
    Tq, D = q.shape
    Tk = k.shape[0]
    c = head_dim
    h = D // c
    hp = math.lcm(c, 128) // c          # heads per block -> lane-dense (>= 128 lanes) blocks
    if hp > h or h % hp:
        hp = h
    tq = _pick_tile(Tq, q_tile, 8)
    tk = _pick_tile(Tk, kv_tile, 128)
    out_dtype = out_dtype or q.dtype
    nq, nk = Tq // tq, Tk // tk

    # Per q-block kv block range (segment extent, optionally causally clipped).
    firsts = jnp.arange(nq, dtype=jnp.int32) * tq
    lasts = firsts + (tq - 1)
    seg_lo = seg_q[firsts]
    seg_hi = seg_q[lasts]
    row_start = boundaries[seg_lo]
    row_end = boundaries[seg_hi + 1]
    if causal:
        row_end = jnp.minimum(row_end, lasts + 1)
    kvs = (row_start // tk).astype(jnp.int32)
    kvc = ((row_end + tk - 1) // tk).astype(jnp.int32) - kvs

    sq = seg_q.reshape(Tq, 1).astype(jnp.int32)
    sk = seg_k.reshape(1, Tk).astype(jnp.int32)

    def kv_block(qi, ki, kvs_ref, kvc_ref):
        # Clamp so out-of-range steps keep re-using the last valid block (no extra DMA).
        return kvs_ref[qi] + jnp.minimum(ki, kvc_ref[qi] - 1)

    kernel = functools.partial(_flash_attn_kernel, head_dim=c, hp=hp,
                               q_tile=tq, kv_tile=tk, causal=causal)
    return pl.pallas_call(
        kernel,
        out_shape=jax.ShapeDtypeStruct((Tq, D), out_dtype),
        grid_spec=pltpu.PrefetchScalarGridSpec(
            num_scalar_prefetch=2,
            grid=(h // hp, nq, nk),
            in_specs=[
                pl.BlockSpec((tq, hp * c), lambda hi, qi, ki, s_, c_: (qi, hi)),
                pl.BlockSpec((tk, hp * c),
                             lambda hi, qi, ki, s_, c_: (kv_block(qi, ki, s_, c_), hi)),
                pl.BlockSpec((tk, hp * c),
                             lambda hi, qi, ki, s_, c_: (kv_block(qi, ki, s_, c_), hi)),
                pl.BlockSpec((tq, 1), lambda hi, qi, ki, s_, c_: (qi, 0)),
                pl.BlockSpec((1, tk),
                             lambda hi, qi, ki, s_, c_: (0, kv_block(qi, ki, s_, c_))),
            ],
            out_specs=pl.BlockSpec((tq, hp * c), lambda hi, qi, ki, s_, c_: (qi, hi)),
            scratch_shapes=[
                pltpu.VMEM((tq, hp), jnp.float32),       # running max per head
                pltpu.VMEM((tq, hp), jnp.float32),       # running denom per head
                pltpu.VMEM((tq, hp * c), jnp.float32),   # output accumulator
            ],
        ),
        compiler_params=_cparams("parallel", "parallel", "arbitrary"),
    )(kvs, kvc, q, k, v, sq, sk)


# ----------------------------------------------------------------------------- Full layer forward
def transformer_layer_forward(params, x, cu_seqlens, max_seqlen, causal=False):
    """x: (total, dim); cu_seqlens: (batch+1,) int32 cumulative sequence lengths."""
    del max_seqlen  # positions are derived directly from cu_seqlens
    # TODO(synk): cross-attention (context=...) path and dropout are not wired; self-attention, eval only.
    dim = x.shape[-1]
    c = params['head_dim']
    T = x.shape[0]

    # Pad the token axis to a multiple of 128; padded rows form an extra segment that never
    # interacts with real tokens and is sliced off at the end.
    T_pad = pl.cdiv(T, 128) * 128
    if T_pad != T:
        x = jnp.pad(x, ((0, T_pad - T), (0, 0)))

    tok = jnp.arange(T_pad, dtype=jnp.int32)
    seg = (jnp.searchsorted(cu_seqlens, tok, side='right') - 1).astype(jnp.int32)
    boundaries = jnp.concatenate([cu_seqlens.astype(jnp.int32),
                                  jnp.array([T_pad], jnp.int32)])
    pos = tok - boundaries[seg]

    bf16 = jnp.bfloat16  # the module casts q/k/v to fp16 for flash-attn; bf16 is the TPU analogue

    # --- attention block: LayerNorm fused into the q/k/v projections ---
    q = ln_linear_pallas(x, params['norm_q_g'], params['norm_q_b'], params['Wq'],
                         None, out_dtype=bf16)
    k = ln_linear_pallas(x, params['norm_kv_g'], params['norm_kv_b'], params['Wk'],
                         params['bk'], out_dtype=bf16)
    v = ln_linear_pallas(x, params['norm_kv_g'], params['norm_kv_b'], params['Wv'],
                         params['bv'], out_dtype=bf16)

    cos_t, sin_a, sin_b = _rope_tables(pos, c)
    q, k = rope_qk_pallas(q, k, cos_t, sin_a, sin_b, q_scale=1.0 / math.sqrt(c))

    o = flash_attention_pallas(q, k, v, seg, seg, boundaries, head_dim=c,
                               causal=causal, out_dtype=x.dtype)
    x = linear_residual_pallas(o, params['Wo'], params['bo'], x)       # x + to_out(o)

    # --- FFN: LN + W1 + GEGLU fused; W2 + residual fused ---
    g = ln_geglu_pallas(x, params['ffn_ln_g'], params['ffn_ln_b'], params['W1'], params['b1'])
    x = linear_residual_pallas(g, params['W2'], params['b2'], x)       # x + ffn(x)

    return x[:T] if T_pad != T else x


# ----------------------------------------------------------------------------- pure-JAX reference
def _reference_forward(params, x, cu_seqlens, causal=False):
    f32 = jnp.float32
    dim = x.shape[-1]
    c = params['head_dim']
    h = dim // c
    T = x.shape[0]

    def ln(z, g, b):
        z = z.astype(f32)
        mu = z.mean(-1, keepdims=True)
        var = ((z - mu) ** 2).mean(-1, keepdims=True)
        return (z - mu) * jax.lax.rsqrt(var + 1e-6) * g + b

    tok = jnp.arange(T, dtype=jnp.int32)
    seg = jnp.searchsorted(cu_seqlens, tok, side='right') - 1
    pos = tok - cu_seqlens[seg]

    q = ln(x, params['norm_q_g'], params['norm_q_b']) @ params['Wq']
    ctx = ln(x, params['norm_kv_g'], params['norm_kv_b'])
    k = ctx @ params['Wk'] + params['bk']
    v = ctx @ params['Wv'] + params['bv']

    inv = 1.0 / (10000.0 ** (jnp.arange(0, c, dtype=f32)[::2] / c))
    ang = pos.astype(f32)[:, None] * inv[None, :]
    cos = jnp.repeat(jnp.cos(ang), 2, axis=-1)[:, None, :]
    sin = jnp.repeat(jnp.sin(ang), 2, axis=-1)[:, None, :]

    def rope(z):
        z3 = z.reshape(T, h, c)
        zr = z3.reshape(T, h, c // 2, 2)
        z1, z2 = zr[..., 0], zr[..., 1]
        zrot = jnp.stack([-z2, z1], axis=-1).reshape(T, h, c)
        return (z3 * cos + zrot * sin).reshape(T, dim)

    q, k = rope(q), rope(k)
    qh = q.reshape(T, h, c).transpose(1, 0, 2)
    kh = k.reshape(T, h, c).transpose(1, 0, 2)
    vh = v.reshape(T, h, c).transpose(1, 0, 2)
    s = jnp.einsum('hqc,hkc->hqk', qh, kh) / jnp.sqrt(jnp.float32(c))
    mask = seg[:, None] == seg[None, :]
    if causal:
        mask = mask & (tok[:, None] >= tok[None, :])
    s = jnp.where(mask[None], s, -1e30)
    p = jax.nn.softmax(s, axis=-1)
    o = jnp.einsum('hqk,hkc->hqc', p, vh).transpose(1, 0, 2).reshape(T, dim)
    x = x + (o @ params['Wo'] + params['bo'])

    xn = ln(x, params['ffn_ln_g'], params['ffn_ln_b'])
    hcat = xn @ params['W1'] + params['b1']
    mid = params['W2'].shape[0]
    g = hcat[:, :mid] * jax.nn.gelu(hcat[:, mid:], approximate=True)
    x = x + (g @ params['W2'] + params['b2'])
    return x


if __name__ == "__main__":
    key = jax.random.PRNGKey(0)
    dim, head_dim, expansion = 128, 64, 4.0
    mid = int(dim * expansion)
    lens = (9, 7)                              # packed batch of 2 unpadded sequences
    T = sum(lens)
    cu = jnp.array([0, lens[0], T], dtype=jnp.int32)
    max_seqlen = max(lens)

    ks = jax.random.split(key, 20)
    nrm = lambda k_, shape, std: std * jax.random.normal(k_, shape, dtype=jnp.float32)
    params = {
        'head_dim': head_dim,
        'norm_q_g': 1.0 + nrm(ks[0], (dim,), 0.1),
        'norm_q_b': nrm(ks[1], (dim,), 0.02),
        'norm_kv_g': 1.0 + nrm(ks[2], (dim,), 0.1),
        'norm_kv_b': nrm(ks[3], (dim,), 0.02),
        'Wq': nrm(ks[4], (dim, dim), 0.02),
        'Wk': nrm(ks[5], (dim, dim), 0.02),
        'bk': nrm(ks[6], (dim,), 0.02),
        'Wv': nrm(ks[7], (dim, dim), 0.02),
        'bv': nrm(ks[8], (dim,), 0.02),
        'Wo': nrm(ks[9], (dim, dim), 0.02),
        'bo': jnp.zeros((dim,), jnp.float32),
        'ffn_ln_g': 1.0 + nrm(ks[10], (dim,), 0.1),
        'ffn_ln_b': nrm(ks[11], (dim,), 0.02),
        'W1': nrm(ks[12], (dim, 2 * mid), 0.02),
        'b1': nrm(ks[13], (2 * mid,), 0.02),
        'W2': nrm(ks[14], (mid, dim), 0.02),
        'b2': nrm(ks[15], (dim,), 0.02),
    }
    x = jax.random.normal(ks[16], (T, dim), dtype=jnp.float32)

    for causal in (False, True):
        out = transformer_layer_forward(params, x, cu, max_seqlen, causal=causal)
        out = jax.block_until_ready(out)
        ref = _reference_forward(params, x, cu, causal=causal)
        assert out.shape == ref.shape and out.dtype == x.dtype
        max_err = float(jnp.max(jnp.abs(out - ref)))
        assert jnp.allclose(out, ref, atol=3e-2, rtol=3e-2), (
            f"mismatch vs reference (causal={causal}, max abs err {max_err})")

    print("KERNEL_OK")
</pallas_src>

<mosaic_0001>
module attributes {stable_mosaic.version = 11 : i64} {
  func.func @_ln_linear_kernel(%arg0: i32, %arg1: i32, %arg2: memref<128x128xf32, #tpu.memory_space<vmem>>, %arg3: memref<1x128xf32, #tpu.memory_space<vmem>>, %arg4: memref<1x128xf32, #tpu.memory_space<vmem>>, %arg5: memref<128x128xf32, #tpu.memory_space<vmem>>, %arg6: memref<1x128xf32, #tpu.memory_space<vmem>>, %arg7: memref<128x128xbf16, #tpu.memory_space<vmem>>) attributes {dimension_semantics = [#tpu.dimension_semantics<parallel>, #tpu.dimension_semantics<parallel>], iteration_bounds = array<i64: 1, 1>, scalar_prefetch = 0 : i64, scratch_operands = 0 : i64, tpu.core_type = #tpu.core_type<tc>, window_params = [{transform_indices = @transform_0, window_bounds = array<i64: 128, 128>}, {pipeline_mode = #tpu.pipeline_mode<synchronous>, transform_indices = @transform_1, window_bounds = array<i64: 1, 128>}, {pipeline_mode = #tpu.pipeline_mode<synchronous>, transform_indices = @transform_2, window_bounds = array<i64: 1, 128>}, {transform_indices = @transform_3, window_bounds = array<i64: 128, 128>}, {transform_indices = @transform_4, window_bounds = array<i64: 1, 128>}, {transform_indices = @transform_5, window_bounds = array<i64: 128, 128>}]} {
    %c0 = arith.constant 0 : index
    %c0_0 = arith.constant 0 : index
    %0 = vector.load %arg2[%c0, %c0_0] : memref<128x128xf32, #tpu.memory_space<vmem>>, vector<128x128xf32>
    %cst = arith.constant dense<0.000000e+00> : vector<128xf32>
    %1 = vector.multi_reduction <add>, %0, %cst [1] : vector<128x128xf32> to vector<128xf32>
    %2 = vector.shape_cast %1 : vector<128xf32> to vector<128x1xf32>
    %cst_1 = arith.constant 1.280000e+02 : f32
    %3 = vector.broadcast %cst_1 : f32 to vector<128x1xf32>
    %4 = arith.divf %2, %3 : vector<128x1xf32>
    %5 = vector.broadcast %4 : vector<128x1xf32> to vector<128x128xf32>
    %6 = arith.subf %0, %5 : vector<128x128xf32>
    %7 = arith.mulf %6, %6 : vector<128x128xf32>
    %cst_2 = arith.constant dense<0.000000e+00> : vector<128xf32>
    %8 = vector.multi_reduction <add>, %7, %cst_2 [1] : vector<128x128xf32> to vector<128xf32>
    %9 = vector.shape_cast %8 : vector<128xf32> to vector<128x1xf32>
    %cst_3 = arith.constant 1.280000e+02 : f32
    %10 = vector.broadcast %cst_3 : f32 to vector<128x1xf32>
    %11 = arith.divf %9, %10 : vector<128x1xf32>
    %cst_4 = arith.constant 9.99999997E-7 : f32
    %12 = vector.broadcast %cst_4 : f32 to vector<128x1xf32>
    %13 = arith.addf %11, %12 : vector<128x1xf32>
    %14 = math.rsqrt %13 : vector<128x1xf32>
    %15 = vector.broadcast %14 : vector<128x1xf32> to vector<128x128xf32>
    %16 = arith.mulf %6, %15 : vector<128x128xf32>
    %c0_5 = arith.constant 0 : index
    %c0_6 = arith.constant 0 : index
    %17 = vector.load %arg3[%c0_5, %c0_6] : memref<1x128xf32, #tpu.memory_space<vmem>>, vector<1x128xf32>
    %18 = vector.broadcast %17 : vector<1x128xf32> to vector<128x128xf32>
    %19 = arith.mulf %16, %18 : vector<128x128xf32>
    %c0_7 = arith.constant 0 : index
    %c0_8 = arith.constant 0 : index
    %20 = vector.load %arg4[%c0_7, %c0_8] : memref<1x128xf32, #tpu.memory_space<vmem>>, vector<1x128xf32>
    %21 = vector.broadcast %20 : vector<1x128xf32> to vector<128x128xf32>
    %22 = arith.addf %19, %21 : vector<128x128xf32>
    %c0_9 = arith.constant 0 : index
    %c0_10 = arith.constant 0 : index
    %23 = vector.load %arg5[%c0_9, %c0_10] : memref<128x128xf32, #tpu.memory_space<vmem>>, vector<128x128xf32>
    %cst_11 = arith.constant dense<0.000000e+00> : vector<128x128xf32>
    %24 = tpu.matmul %22, %23, %cst_11 {dimension_numbers = #tpu.dot_dimension_numbers<[1], [0], [0], [1], [0, 0, 1, 1], [], []>} : vector<128x128xf32>, vector<128x128xf32>, vector<128x128xf32> -> vector<128x128xf32>
    %c0_12 = arith.constant 0 : index
    %c0_13 = arith.constant 0 : index
    %25 = vector.load %arg6[%c0_12, %c0_13] : memref<1x128xf32, #tpu.memory_space<vmem>>, vector<1x128xf32>
    %26 = vector.broadcast %25 : vector<1x128xf32> to vector<128x128xf32>
    %27 = arith.addf %24, %26 : vector<128x128xf32>
    %28 = arith.truncf %27 : vector<128x128xf32> to vector<128x128xbf16>
    %c0_14 = arith.constant 0 : index
    %c0_15 = arith.constant 0 : index
    %29 = vector.load %arg7[%c0_14, %c0_15] : memref<128x128xbf16, #tpu.memory_space<vmem>>, vector<128x128xbf16>
    tpu.vector_store %arg7[%c0_14, %c0_15], %28 {strides = array<i32>} : memref<128x128xbf16, #tpu.memory_space<vmem>>, vector<128x128xbf16>,
    return
  }
  func.func @transform_0(%arg0: i32, %arg1: i32) -> (i32, i32) {
    %c0_i32 = arith.constant 0 : i32
    %c0_i32_0 = arith.constant 0 : i32
    return %arg0, %c0_i32 : i32, i32
  }
  func.func @transform_1(%arg0: i32, %arg1: i32) -> (i32, i32) {
    %c0_i32 = arith.constant 0 : i32
    %c0_i32_0 = arith.constant 0 : i32
    %c0_i32_1 = arith.constant 0 : i32
    return %c0_i32, %c0_i32_0 : i32, i32
  }
  func.func @transform_2(%arg0: i32, %arg1: i32) -> (i32, i32) {
    %c0_i32 = arith.constant 0 : i32
    %c0_i32_0 = arith.constant 0 : i32
    %c0_i32_1 = arith.constant 0 : i32
    return %c0_i32, %c0_i32_0 : i32, i32
  }
  func.func @transform_3(%arg0: i32, %arg1: i32) -> (i32, i32) {
    %c0_i32 = arith.constant 0 : i32
    %c0_i32_0 = arith.constant 0 : i32
    return %c0_i32, %arg1 : i32, i32
  }
  func.func @transform_4(%arg0: i32, %arg1: i32) -> (i32, i32) {
    %c0_i32 = arith.constant 0 : i32
    %c0_i32_0 = arith.constant 0 : i32
    return %c0_i32, %arg1 : i32, i32
  }
  func.func @transform_5(%arg0: i32, %arg1: i32) -> (i32, i32) {
    %c0_i32 = arith.constant 0 : i32
    return %arg0, %arg1 : i32, i32
  }
}

</mosaic_0001>

<llo_original>
// kernel: tpu_custom_call.1
$region0: #{tpu_custom_call.1}
  #allocation0 [shape = 'u32[]', space=smem, size = 0x4, offset = 0x4, fixed_abs, tag = 'smem constant byte address 0x4 - core index']
  #allocation1 [shape = 'u32[72,128]{1,0:T(1,128)}', space=vmem, size = 0x9000, scoped, tag = 'internal scratch']
  %s0 = inlined_call_operand.hbm [shape: f32[128,128], index: 0, kind: input, shape index: {}]
  %s1 = inlined_call_operand.hbm [shape: f32[1,128], index: 1, kind: input, shape index: {}]
  %s2 = inlined_call_operand.vmem [shape: f32[1,128], index: 2, kind: input, shape index: {}]
  %s3 = inlined_call_operand.hbm [shape: f32[128,128], index: 3, kind: input, shape index: {}]
  %s4 = inlined_call_operand.vmem [shape: f32[1,128], index: 4, kind: input, shape index: {}]
  %s5 = inlined_call_operand.hbm [shape: bf16[128,128], index: 5, kind: output, shape index: {}]
  %s6 = sld [smem:[#allocation0]]
  $region42: #{tpu_custom_call.1} parent=0
    _
  %s8 = ssub.s32 1, %s6
  %s9 = scalar_select 0, %s8, %s6
  $region1: #{tpu_custom_call.1} parent=0
    #allocation2 [shape = 'u8[65536]{0}', space=vmem, size = 0x10000, scoped, tag = 'input window, operand 0, single buffered']
    #allocation3 [shape = 's32[1]{0}', space=sflag, size = 0x4, scoped, tag = 'scoped memory for tpu_custom_call.1']
    #allocation4 [shape = 's32[1]{0}', space=sflag, size = 0x4, scoped, tag = 'scoped memory for tpu_custom_call.1']
    #allocation5 [shape = 'u8[512]{0}', space=vmem, size = 0x400, scoped, tag = 'input window, operand 1, single buffered']
    #allocation6 [shape = 's32[1]{0}', space=sflag, size = 0x4, scoped, tag = 'scoped memory for tpu_custom_call.1']
    #allocation7 [shape = 'u8[65536]{0}', space=vmem, size = 0x10000, scoped, tag = 'input window, operand 3, single buffered']
    #allocation8 [shape = 'u8[32768]{0}', space=vmem, size = 0x8000, scoped, tag = 'output window, operand 0, single buffered']
    %10 = vsyncpa [#allocation3], 0
    %11 = vsyncpa [#allocation6], 0
    %12 = vsyncpa [#allocation4], 0
    // Predicated region
    $region2: #{tpu_custom_call.1} parent=1 // pred_check
      _
    $region3: #{tpu_custom_call.1} parent=1 // pred_check_branch
      %14 = sbr.rel (0) target = $region5
    $region4: #{tpu_custom_call.1} parent=1 // pred_region
      %16 = vsyncadd [#allocation3], 0
      %s17 = sshll.u32 %s0, 4
      %s18 = int_to_ptr.hbm [resolvable:$true] %s17
      %s19 = sshll.u32 [#allocation2], 4
      %s20 = int_to_ptr.vmem [resolvable:$true] %s19
      %25 = dma.hbm_to_vmem [thread:$0]  %s18, 2048, %s20, [#allocation3], 128, 128, 8
    $region5: #{tpu_custom_call.1} parent=1 // pred_fallthru
      _
    // Predicated region
    $region6: #{tpu_custom_call.1} parent=1 // pred_check
      _
    $region7: #{tpu_custom_call.1} parent=1 // pred_check_branch
      %27 = sbr.rel (0) target = $region9
    $region8: #{tpu_custom_call.1} parent=1 // pred_region
      %29 = vsyncadd [#allocation6], 0
      %s31 = sshll.u32 %s1, 4
      %s32 = int_to_ptr.hbm [resolvable:$true] %s31
      %s33 = sshll.u32 [#allocation5], 4
      %s34 = int_to_ptr.vmem [resolvable:$true] %s33
      %36 = dma.hbm_to_vmem [thread:$0]  %s32, 16, %s34, [#allocation6]
    $region9: #{tpu_custom_call.1} parent=1 // pred_fallthru
      _
    // Predicated region
    $region10: #{tpu_custom_call.1} parent=1 // pred_check
      _
    $region11: #{tpu_custom_call.1} parent=1 // pred_check_branch
      %38 = sbr.rel (0) target = $region13
    $region12: #{tpu_custom_call.1} parent=1 // pred_region
      _
    $region13: #{tpu_custom_call.1} parent=1 // pred_fallthru
      _
    // Predicated region
    $region14: #{tpu_custom_call.1} parent=1 // pred_check
      _
    $region15: #{tpu_custom_call.1} parent=1 // pred_check_branch
      %40 = sbr.rel (0) target = $region17
    $region16: #{tpu_custom_call.1} parent=1 // pred_region
      %42 = vsyncadd [#allocation6], 0
      %s43 = sshll.u32 %s3, 4
      %s44 = int_to_ptr.hbm [resolvable:$true] %s43
      %s45 = sshll.u32 [#allocation7], 4
      %s46 = int_to_ptr.vmem [resolvable:$true] %s45
      %51 = dma.hbm_to_vmem [thread:$0]  %s44, 2048, %s46, [#allocation6], 128, 128, 8
    $region17: #{tpu_custom_call.1} parent=1 // pred_fallthru
      _
    // Predicated region
    $region18: #{tpu_custom_call.1} parent=1 // pred_check
      _
    $region19: #{tpu_custom_call.1} parent=1 // pred_check_branch
      %53 = sbr.rel (0) target = $region21
    $region20: #{tpu_custom_call.1} parent=1 // pred_region
      _
    $region21: #{tpu_custom_call.1} parent=1 // pred_fallthru
      _
    // Predicated region
    $region22: #{tpu_custom_call.1} parent=1 // pred_check
      _
    $region23: #{tpu_custom_call.1} parent=1 // pred_check_branch
      %55 = sbr.rel (0) target = $region25
    $region24: #{tpu_custom_call.1} parent=1 // pred_region
      %57 = dma.done [#allocation3], 2048
    $region25: #{tpu_custom_call.1} parent=1 // pred_fallthru
      _
    // Predicated region
    $region26: #{tpu_custom_call.1} parent=1 // pred_check
      _
    $region27: #{tpu_custom_call.1} parent=1 // pred_check_branch
      %59 = sbr.rel (0) target = $region29
    $region28: #{tpu_custom_call.1} parent=1 // pred_region
      %61 = dma.done [#allocation6], 16
    $region29: #{tpu_custom_call.1} parent=1 // pred_fallthru
      _
    // Predicated region
    $region30: #{tpu_custom_call.1} parent=1 // pred_check
      _
    $region31: #{tpu_custom_call.1} parent=1 // pred_check_branch
      %63 = sbr.rel (0) target = $region33
    $region32: #{tpu_custom_call.1} parent=1 // pred_region
      %65 = dma.done [#allocation6], 2048
    $region33: #{tpu_custom_call.1} parent=1 // pred_fallthru
      _
    %v66 = vld [vmem:[#allocation2] sm:$0xff]
    %v67 = vld [vmem:[#allocation2 + $0x8] sm:$0xff]
    %v68 = vld [vmem:[#allocation2 + $0x10] sm:$0xff]
    %v69 = vld [vmem:[#allocation2 + $0x18] sm:$0xff]
    %v70 = vld [vmem:[#allocation2 + $0x20] sm:$0xff]
    %v71 = vld [vmem:[#allocation2 + $0x28] sm:$0xff]
    %v72 = vld [vmem:[#allocation2 + $0x30] sm:$0xff]
    %v73 = vld [vmem:[#allocation2 + $0x38] sm:$0xff]
    %v74 = vld [vmem:[#allocation2 + $0x40] sm:$0xff]
    %v75 = vld [vmem:[#allocation2 + $0x48] sm:$0xff]
    %v76 = vld [vmem:[#allocation2 + $0x50] sm:$0xff]
    %v77 = vld [vmem:[#allocation2 + $0x58] sm:$0xff]
    %v78 = vld [vmem:[#allocation2 + $0x60] sm:$0xff]
    %v79 = vld [vmem:[#allocation2 + $0x68] sm:$0xff]
    %v80 = vld [vmem:[#allocation2 + $0x70] sm:$0xff]
    %v81 = vld [vmem:[#allocation2 + $0x78] sm:$0xff]
    %82 = vadd.xlane.f32.xlu0 %v66
    %v83 = vpop.xlane.xlu0 %82
    %84 = vadd.xlane.f32.xlu0 %v67
    %v85 = vpop.xlane.xlu0 %84
    %86 = vadd.xlane.f32.xlu0 %v68
    %v87 = vpop.xlane.xlu0 %86
    %88 = vadd.xlane.f32.xlu0 %v69
    %v89 = vpop.xlane.xlu0 %88
    %90 = vadd.xlane.f32.xlu0 %v70
    %v91 = vpop.xlane.xlu0 %90
    %92 = vadd.xlane.f32.xlu0 %v71
    %v93 = vpop.xlane.xlu0 %92
    %94 = vadd.xlane.f32.xlu0 %v72
    %v95 = vpop.xlane.xlu0 %94
    %96 = vadd.xlane.f32.xlu0 %v73
    %v97 = vpop.xlane.xlu0 %96
    %98 = vadd.xlane.f32.xlu0 %v74
    %v99 = vpop.xlane.xlu0 %98
    %100 = vadd.xlane.f32.xlu0 %v75
    %v101 = vpop.xlane.xlu0 %100
    %102 = vadd.xlane.f32.xlu0 %v76
    %v103 = vpop.xlane.xlu0 %102
    %104 = vadd.xlane.f32.xlu0 %v77
    %v105 = vpop.xlane.xlu0 %104
    %106 = vadd.xlane.f32.xlu0 %v78
    %v107 = vpop.xlane.xlu0 %106
    %108 = vadd.xlane.f32.xlu0 %v79
    %v109 = vpop.xlane.xlu0 %108
    %110 = vadd.xlane.f32.xlu0 %v80
    %v111 = vpop.xlane.xlu0 %110
    %112 = vadd.xlane.f32.xlu0 %v81
    %v113 = vpop.xlane.xlu0 %112
    %v114 = vrcp.pop 128.0
    %v115 = vmul.f32 128.0, %v114
    %v116 = vsub.f32 1.0, %v115
    %v117 = vmul.f32 %v114, %v116
    %v118 = vadd.f32 %v114, %v117
    %vm119 = vweird.f32 %v114
    %v120 = vsel %vm119, %v114, %v118
    %v121 = vmul.f32 %v83, %v120
    %v122 = vmul.f32 %v85, %v120
    %v123 = vmul.f32 %v87, %v120
    %v124 = vmul.f32 %v89, %v120
    %v125 = vmul.f32 %v91, %v120
    %v126 = vmul.f32 %v93, %v120
    %v127 = vmul.f32 %v95, %v120
    %v128 = vmul.f32 %v97, %v120
    %v129 = vmul.f32 %v99, %v120
    %v130 = vmul.f32 %v101, %v120
    %v131 = vmul.f32 %v103, %v120
    %v132 = vmul.f32 %v105, %v120
    %v133 = vmul.f32 %v107, %v120
    %v134 = vmul.f32 %v109, %v120
    %v135 = vmul.f32 %v111, %v120
    %v136 = vmul.f32 %v113, %v120
    %v137 = vsub.f32 %v66, %v121
    %v138 = vsub.f32 %v67, %v122
    %v139 = vsub.f32 %v68, %v123
    %v140 = vsub.f32 %v69, %v124
    %v141 = vsub.f32 %v70, %v125
    %v142 = vsub.f32 %v71, %v126
    %v143 = vsub.f32 %v72, %v127
    %v144 = vsub.f32 %v73, %v128
    %v145 = vsub.f32 %v74, %v129
    %v146 = vsub.f32 %v75, %v130
    %v147 = vsub.f32 %v76, %v131
    %v148 = vsub.f32 %v77, %v132
    %v149 = vsub.f32 %v78, %v133
    %v150 = vsub.f32 %v79, %v134
    %v151 = vsub.f32 %v80, %v135
    %v152 = vsub.f32 %v81, %v136
    %v153 = vmul.f32 %v137, %v137
    %v154 = vmul.f32 %v138, %v138
    %v155 = vmul.f32 %v139, %v139
    %v156 = vmul.f32 %v140, %v140
    %v157 = vmul.f32 %v141, %v141
    %v158 = vmul.f32 %v142, %v142
    %v159 = vmul.f32 %v143, %v143
    %v160 = vmul.f32 %v144, %v144
    %v161 = vmul.f32 %v145, %v145
    %v162 = vmul.f32 %v146, %v146
    %v163 = vmul.f32 %v147, %v147
    %v164 = vmul.f32 %v148, %v148
    %v165 = vmul.f32 %v149, %v149
    %v166 = vmul.f32 %v150, %v150
    %v167 = vmul.f32 %v151, %v151
    %v168 = vmul.f32 %v152, %v152
    %169 = vadd.xlane.f32.xlu0 %v153
    %v170 = vpop.xlane.xlu0 %169
    %171 = vadd.xlane.f32.xlu0 %v154
    %v172 = vpop.xlane.xlu0 %171
    %173 = vadd.xlane.f32.xlu0 %v155
    %v174 = vpop.xlane.xlu0 %173
    %175 = vadd.xlane.f32.xlu0 %v156
    %v176 = vpop.xlane.xlu0 %175
    %177 = vadd.xlane.f32.xlu0 %v157
    %v178 = vpop.xlane.xlu0 %177
    %179 = vadd.xlane.f32.xlu0 %v158
    %v180 = vpop.xlane.xlu0 %179
    %181 = vadd.xlane.f32.xlu0 %v159
    %v182 = vpop.xlane.xlu0 %181
    %183 = vadd.xlane.f32.xlu0 %v160
    %v184 = vpop.xlane.xlu0 %183
    %185 = vadd.xlane.f32.xlu0 %v161
    %v186 = vpop.xlane.xlu0 %185
    %187 = vadd.xlane.f32.xlu0 %v162
    %v188 = vpop.xlane.xlu0 %187
    %189 = vadd.xlane.f32.xlu0 %v163
    %v190 = vpop.xlane.xlu0 %189
    %191 = vadd.xlane.f32.xlu0 %v164
    %v192 = vpop.xlane.xlu0 %191
    %193 = vadd.xlane.f32.xlu0 %v165
    %v194 = vpop.xlane.xlu0 %193
    %195 = vadd.xlane.f32.xlu0 %v166
    %v196 = vpop.xlane.xlu0 %195
    %197 = vadd.xlane.f32.xlu0 %v167
    %v198 = vpop.xlane.xlu0 %197
    %199 = vadd.xlane.f32.xlu0 %v168
    %v200 = vpop.xlane.xlu0 %199
    %v201 = vmul.f32 %v170, %v120
    %v202 = vmul.f32 %v172, %v120
    %v203 = vmul.f32 %v174, %v120
    %v204 = vmul.f32 %v176, %v120
    %v205 = vmul.f32 %v178, %v120
    %v206 = vmul.f32 %v180, %v120
    %v207 = vmul.f32 %v182, %v120
    %v208 = vmul.f32 %v184, %v120
    %v209 = vmul.f32 %v186, %v120
    %v210 = vmul.f32 %v188, %v120
    %v211 = vmul.f32 %v190, %v120
    %v212 = vmul.f32 %v192, %v120
    %v213 = vmul.f32 %v194, %v120
    %v214 = vmul.f32 %v196, %v120
    %v215 = vmul.f32 %v198, %v120
    %v216 = vmul.f32 %v200, %v120
    %v217 = vadd.f32 %v201, 1e-06
    %v218 = vadd.f32 %v202, 1e-06
    %v219 = vadd.f32 %v203, 1e-06
    %v220 = vadd.f32 %v204, 1e-06
    %v221 = vadd.f32 %v205, 1e-06
    %v222 = vadd.f32 %v206, 1e-06
    %v223 = vadd.f32 %v207, 1e-06
    %v224 = vadd.f32 %v208, 1e-06
    %v225 = vadd.f32 %v209, 1e-06
    %v226 = vadd.f32 %v210, 1e-06
    %v227 = vadd.f32 %v211, 1e-06
    %v228 = vadd.f32 %v212, 1e-06
    %v229 = vadd.f32 %v213, 1e-06
    %v230 = vadd.f32 %v214, 1e-06
    %v231 = vadd.f32 %v215, 1e-06
    %v232 = vadd.f32 %v216, 1e-06
    %v233 = vrsqrt.pop %v217
    %v234 = vmul.f32 %v233, %v217
    %v235 = vmul.f32 %v234, %v233
    %v236 = vmul.f32 0.5, %v235
    %v237 = vsub.f32 1.5, %v236
    %v238 = vmul.f32 %v233, %v237
    %vm239 = vweird.f32 %v217
    %vm240 = vweird.f32 %v233
    %vm241 = vmor %vm239, %vm240
    %v242 = vsel %vm241, %v233, %v238
    %v243 = vrsqrt.pop %v218
    %v244 = vmul.f32 %v243, %v218
    %v245 = vmul.f32 %v244, %v243
    %v246 = vmul.f32 0.5, %v245
    %v247 = vsub.f32 1.5, %v246
    %v248 = vmul.f32 %v243, %v247
    %vm249 = vweird.f32 %v218
    %vm250 = vweird.f32 %v243
    %vm251 = vmor %vm249, %vm250
    %v252 = vsel %vm251, %v243, %v248
    %v253 = vrsqrt.pop %v219
    %v254 = vmul.f32 %v253, %v219
    %v255 = vmul.f32 %v254, %v253
    %v256 = vmul.f32 0.5, %v255
    %v257 = vsub.f32 1.5, %v256
    %v258 = vmul.f32 %v253, %v257
    %vm259 = vweird.f32 %v219
    %vm260 = vweird.f32 %v253
    %vm261 = vmor %vm259, %vm260
    %v262 = vsel %vm261, %v253, %v258
    %v263 = vrsqrt.pop %v220
    %v264 = vmul.f32 %v263, %v220
    %v265 = vmul.f32 %v264, %v263
    %v266 = vmul.f32 0.5, %v265
    %v267 = vsub.f32 1.5, %v266
    %v268 = vmul.f32 %v263, %v267
    %vm269 = vweird.f32 %v220
    %vm270 = vweird.f32 %v263
    %vm271 = vmor %vm269, %vm270
    %v272 = vsel %vm271, %v263, %v268
    %v273 = vrsqrt.pop %v221
    %v274 = vmul.f32 %v273, %v221
    %v275 = vmul.f32 %v274, %v273
    %v276 = vmul.f32 0.5, %v275
    %v277 = vsub.f32 1.5, %v276
    %v278 = vmul.f32 %v273, %v277
    %vm279 = vweird.f32 %v221
    %vm280 = vweird.f32 %v273
    %vm281 = vmor %vm279, %vm280
    %v282 = vsel %vm281, %v273, %v278
    %v283 = vrsqrt.pop %v222
    %v284 = vmul.f32 %v283, %v222
    %v285 = vmul.f32 %v284, %v283
    %v286 = vmul.f32 0.5, %v285
    %v287 = vsub.f32 1.5, %v286
    %v288 = vmul.f32 %v283, %v287
    %vm289 = vweird.f32 %v222
    %vm290 = vweird.f32 %v283
    %vm291 = vmor %vm289, %vm290
    %v292 = vsel %vm291, %v283, %v288
    %v293 = vrsqrt.pop %v223
    %v294 = vmul.f32 %v293, %v223
    %v295 = vmul.f32 %v294, %v293
    %v296 = vmul.f32 0.5, %v295
    %v297 = vsub.f32 1.5, %v296
    %v298 = vmul.f32 %v293, %v297
    %vm299 = vweird.f32 %v223
    %vm300 = vweird.f32 %v293
    %vm301 = vmor %vm299, %vm300
    %v302 = vsel %vm301, %v293, %v298
    %v303 = vrsqrt.pop %v224
    %v304 = vmul.f32 %v303, %v224
    %v305 = vmul.f32 %v304, %v303
    %v306 = vmul.f32 0.5, %v305
    %v307 = vsub.f32 1.5, %v306
    %v308 = vmul.f32 %v303, %v307
    %vm309 = vweird.f32 %v224
    %vm310 = vweird.f32 %v303
    %vm311 = vmor %vm309, %vm310
    %v312 = vsel %vm311, %v303, %v308
    %v313 = vrsqrt.pop %v225
    %v314 = vmul.f32 %v313, %v225
    %v315 = vmul.f32 %v314, %v313
    %v316 = vmul.f32 0.5, %v315
    %v317 = vsub.f32 1.5, %v316
    %v318 = vmul.f32 %v313, %v317
    %vm319 = vweird.f32 %v225
    %vm320 = vweird.f32 %v313
    %vm321 = vmor %vm319, %vm320
    %v322 = vsel %vm321, %v313, %v318
    %v323 = vrsqrt.pop %v226
    %v324 = vmul.f32 %v323, %v226
    %v325 = vmul.f32 %v324, %v323
    %v326 = vmul.f32 0.5, %v325
    %v327 = vsub.f32 1.5, %v326
    %v328 = vmul.f32 %v323, %v327
    %vm329 = vweird.f32 %v226
    %vm330 = vweird.f32 %v323
    %vm331 = vmor %vm329, %vm330
    %v332 = vsel %vm331, %v323, %v328
    %v333 = vrsqrt.pop %v227
    %v334 = vmul.f32 %v333, %v227
    %v335 = vmul.f32 %v334, %v333
    %v336 = vmul.f32 0.5, %v335
    %v337 = vsub.f32 1.5, %v336
    %v338 = vmul.f32 %v333, %v337
    %vm339 = vweird.f32 %v227
    %vm340 = vweird.f32 %v333
    %vm341 = vmor %vm339, %vm340
    %v342 = vsel %vm341, %v333, %v338
    %v343 = vrsqrt.pop %v228
    %v344 = vmul.f32 %v343, %v228
    %v345 = vmul.f32 %v344, %v343
    %v346 = vmul.f32 0.5, %v345
    %v347 = vsub.f32 1.5, %v346
    %v348 = vmul.f32 %v343, %v347
    %vm349 = vweird.f32 %v228
    %vm350 = vweird.f32 %v343
    %vm351 = vmor %vm349, %vm350
    %v352 = vsel %vm351, %v343, %v348
    %v353 = vrsqrt.pop %v229
    %v354 = vmul.f32 %v353, %v229
    %v355 = vmul.f32 %v354, %v353
    %v356 = vmul.f32 0.5, %v355
    %v357 = vsub.f32 1.5, %v356
    %v358 = vmul.f32 %v353, %v357
    %vm359 = vweird.f32 %v229
    %vm360 = vweird.f32 %v353
    %vm361 = vmor %vm359, %vm360
    %v362 = vsel %vm361, %v353, %v358
    %v363 = vrsqrt.pop %v230
    %v364 = vmul.f32 %v363, %v230
    %v365 = vmul.f32 %v364, %v363
    %v366 = vmul.f32 0.5, %v365
    %v367 = vsub.f32 1.5, %v366
    %v368 = vmul.f32 %v363, %v367
    %vm369 = vweird.f32 %v230
    %vm370 = vweird.f32 %v363
    %vm371 = vmor %vm369, %vm370
    %v372 = vsel %vm371, %v363, %v368
    %v373 = vrsqrt.pop %v231
    %v374 = vmul.f32 %v373, %v231
    %v375 = vmul.f32 %v374, %v373
    %v376 = vmul.f32 0.5, %v375
    %v377 = vsub.f32 1.5, %v376
    %v378 = vmul.f32 %v373, %v377
    %vm379 = vweird.f32 %v231
    %vm380 = vweird.f32 %v373
    %vm381 = vmor %vm379, %vm380
    %v382 = vsel %vm381, %v373, %v378
    %v383 = vrsqrt.pop %v232
    %v384 = vmul.f32 %v383, %v232
    %v385 = vmul.f32 %v384, %v383
    %v386 = vmul.f32 0.5, %v385
    %v387 = vsub.f32 1.5, %v386
    %v388 = vmul.f32 %v383, %v387
    %vm389 = vweird.f32 %v232
    %vm390 = vweird.f32 %v383
    %vm391 = vmor %vm389, %vm390
    %v392 = vsel %vm391, %v383, %v388
    %v393 = vmul.f32 %v137, %v242
    %v394 = vmul.f32 %v138, %v252
    %v395 = vmul.f32 %v139, %v262
    %v396 = vmul.f32 %v140, %v272
    %v397 = vmul.f32 %v141, %v282
    %v398 = vmul.f32 %v142, %v292
    %v399 = vmul.f32 %v143, %v302
    %v400 = vmul.f32 %v144, %v312
    %v401 = vmul.f32 %v145, %v322
    %v402 = vmul.f32 %v146, %v332
    %v403 = vmul.f32 %v147, %v342
    %v404 = vmul.f32 %v148, %v352
    %v405 = vmul.f32 %v149, %v362
    %v406 = vmul.f32 %v150, %v372
    %v407 = vmul.f32 %v151, %v382
    %v408 = vmul.f32 %v152, %v392
    %v409 = vld [vmem:[#allocation5] sm:$0x1]
    %v411 = vperm.slane %v409, 0
    %v413 = vmul.f32 %v393, %v411
    %v414 = vmul.f32 %v394, %v411
    %v415 = vmul.f32 %v395, %v411
    %v416 = vmul.f32 %v396, %v411
    %v417 = vmul.f32 %v397, %v411
    %v418 = vmul.f32 %v398, %v411
    %v419 = vmul.f32 %v399, %v411
    %v420 = vmul.f32 %v400, %v411
    %v421 = vmul.f32 %v401, %v411
    %v422 = vmul.f32 %v402, %v411
    %v423 = vmul.f32 %v403, %v411
    %v424 = vmul.f32 %v404, %v411
    %v425 = vmul.f32 %v405, %v411
    %v426 = vmul.f32 %v406, %v411
    %v427 = vmul.f32 %v407, %v411
    %v428 = vmul.f32 %v408, %v411
    %v429 = vld [vmem:[%s2] sm:$0x1]
    %v431 = vperm.slane %v429, 0
    %v433 = vadd.f32 %v413, %v431
    %v434 = vadd.f32 %v414, %v431
    %v435 = vadd.f32 %v415, %v431
    %v436 = vadd.f32 %v416, %v431
    %v437 = vadd.f32 %v417, %v431
    %v438 = vadd.f32 %v418, %v431
    %v439 = vadd.f32 %v419, %v431
    %v440 = vadd.f32 %v420, %v431
    %v441 = vadd.f32 %v421, %v431
    %v442 = vadd.f32 %v422, %v431
    %v443 = vadd.f32 %v423, %v431
    %v444 = vadd.f32 %v424, %v431
    %v445 = vadd.f32 %v425, %v431
    %v446 = vadd.f32 %v426, %v431
    %v447 = vadd.f32 %v427, %v431
    %v448 = vadd.f32 %v428, %v431
    %v449 = vld [vmem:[#allocation7] sm:$0xff]
    %v450 = vld [vmem:[#allocation7 + $0x8] sm:$0xff]
    %v451 = vld [vmem:[#allocation7 + $0x10] sm:$0xff]
    %v452 = vld [vmem:[#allocation7 + $0x18] sm:$0xff]
    %v453 = vld [vmem:[#allocation7 + $0x20] sm:$0xff]
    %v454 = vld [vmem:[#allocation7 + $0x28] sm:$0xff]
    %v455 = vld [vmem:[#allocation7 + $0x30] sm:$0xff]
    %v456 = vld [vmem:[#allocation7 + $0x38] sm:$0xff]
    %v457 = vld [vmem:[#allocation7 + $0x40] sm:$0xff]
    %v458 = vld [vmem:[#allocation7 + $0x48] sm:$0xff]
    %v459 = vld [vmem:[#allocation7 + $0x50] sm:$0xff]
    %v460 = vld [vmem:[#allocation7 + $0x58] sm:$0xff]
    %v461 = vld [vmem:[#allocation7 + $0x60] sm:$0xff]
    %v462 = vld [vmem:[#allocation7 + $0x68] sm:$0xff]
    %v463 = vld [vmem:[#allocation7 + $0x70] sm:$0xff]
    %v464 = vld [vmem:[#allocation7 + $0x78] sm:$0xff]
    %v465 = vld [vmem:[%s4] sm:$0x1]
    %v467 = vperm.slane %v465, 0
    %469 = vmatpush.msra.mxu0 %v464
    %470 = vmatpush.msra.mxu0 %v463
    %471 = vmatpush.msra.mxu0 %v462
    %472 = vmatpush.msra.mxu0 %v461
    %473 = vmatpush.msra.mxu0 %v460
    %474 = vmatpush.msra.mxu0 %v459
    %475 = vmatpush.msra.mxu0 %v458
    %476 = vmatpush.msra.mxu0 %v457
    %477 = vmatpush.msra.mxu0 %v456
    %478 = vmatpush.msra.mxu0 %v455
    %479 = vmatpush.msra.mxu0 %v454
    %480 = vmatpush.msra.mxu0 %v453
    %481 = vmatpush.msra.mxu0 %v452
    %482 = vmatpush.msra.mxu0 %v451
    %483 = vmatpush.msra.mxu0 %v450
    %484 = vmatpush.msra.mxu0 %v449
    %485 = vmatmul.f32.gmra.mxu0 %v433
    %v486 = vpop.f32.mrf.mxu0
    %v487 = vadd.f32 %v467, %v486
    %488 = vmatmul.f32.gmra.mxu0 %v434
    %v489 = vpop.f32.mrf.mxu0
    %v490 = vadd.f32 %v467, %v489
    %491 = vmatmul.f32.gmra.mxu0 %v435
    %v492 = vpop.f32.mrf.mxu0
    %v493 = vadd.f32 %v467, %v492
    %494 = vmatmul.f32.gmra.mxu0 %v436
    %v495 = vpop.f32.mrf.mxu0
    %v496 = vadd.f32 %v467, %v495
    %497 = vmatmul.f32.gmra.mxu0 %v437
    %v498 = vpop.f32.mrf.mxu0
    %v499 = vadd.f32 %v467, %v498
    %500 = vmatmul.f32.gmra.mxu0 %v438
    %v501 = vpop.f32.mrf.mxu0
    %v502 = vadd.f32 %v467, %v501
    %503 = vmatmul.f32.gmra.mxu0 %v439
    %v504 = vpop.f32.mrf.mxu0
    %v505 = vadd.f32 %v467, %v504
    %506 = vmatmul.f32.gmra.mxu0 %v440
    %v507 = vpop.f32.mrf.mxu0
    %v508 = vadd.f32 %v467, %v507
    %509 = vmatmul.f32.gmra.mxu0 %v441
    %v510 = vpop.f32.mrf.mxu0
    %v511 = vadd.f32 %v467, %v510
    %512 = vmatmul.f32.gmra.mxu0 %v442
    %v513 = vpop.f32.mrf.mxu0
    %v514 = vadd.f32 %v467, %v513
    %515 = vmatmul.f32.gmra.mxu0 %v443
    %v516 = vpop.f32.mrf.mxu0
    %v517 = vadd.f32 %v467, %v516
    %518 = vmatmul.f32.gmra.mxu0 %v444
    %v519 = vpop.f32.mrf.mxu0
    %v520 = vadd.f32 %v467, %v519
    %521 = vmatmul.f32.gmra.mxu0 %v445
    %v522 = vpop.f32.mrf.mxu0
    %v523 = vadd.f32 %v467, %v522
    %524 = vmatmul.f32.gmra.mxu0 %v446
    %v525 = vpop.f32.mrf.mxu0
    %v526 = vadd.f32 %v467, %v525
    %527 = vmatmul.f32.gmra.mxu0 %v447
    %v528 = vpop.f32.mrf.mxu0
    %v529 = vadd.f32 %v467, %v528
    %530 = vmatmul.f32.gmra.mxu0 %v448
    %v531 = vpop.f32.mrf.mxu0
    %v532 = vadd.f32 %v467, %v531
    %533 = vdwg.mxu0
    %v534 = vpack.c.bf16 %v487, %v487
    %v535 = vpack.c.bf16 %v490, %v490
    %v536 = vpack.c.bf16 %v493, %v493
    %v537 = vpack.c.bf16 %v496, %v496
    %v538 = vpack.c.bf16 %v499, %v499
    %v539 = vpack.c.bf16 %v502, %v502
    %v540 = vpack.c.bf16 %v505, %v505
    %v541 = vpack.c.bf16 %v508, %v508
    %v542 = vpack.c.bf16 %v511, %v511
    %v543 = vpack.c.bf16 %v514, %v514
    %v544 = vpack.c.bf16 %v517, %v517
    %v545 = vpack.c.bf16 %v520, %v520
    %v546 = vpack.c.bf16 %v523, %v523
    %v547 = vpack.c.bf16 %v526, %v526
    %v548 = vpack.c.bf16 %v529, %v529
    %v549 = vpack.c.bf16 %v532, %v532
    %550 = vst [vmem:[#allocation8] sm:$0xf] %v534
    %551 = vst [vmem:[#allocation8 + $0x4] sm:$0xf] %v535
    %552 = vst [vmem:[#allocation8 + $0x8] sm:$0xf] %v536
    %553 = vst [vmem:[#allocation8 + $0xc] sm:$0xf] %v537
    %554 = vst [vmem:[#allocation8 + $0x10] sm:$0xf] %v538
    %555 = vst [vmem:[#allocation8 + $0x14] sm:$0xf] %v539
    %556 = vst [vmem:[#allocation8 + $0x18] sm:$0xf] %v540
    %557 = vst [vmem:[#allocation8 + $0x1c] sm:$0xf] %v541
    %558 = vst [vmem:[#allocation8 + $0x20] sm:$0xf] %v542
    %559 = vst [vmem:[#allocation8 + $0x24] sm:$0xf] %v543
    %560 = vst [vmem:[#allocation8 + $0x28] sm:$0xf] %v544
    %561 = vst [vmem:[#allocation8 + $0x2c] sm:$0xf] %v545
    %562 = vst [vmem:[#allocation8 + $0x30] sm:$0xf] %v546
    %563 = vst [vmem:[#allocation8 + $0x34] sm:$0xf] %v547
    %564 = vst [vmem:[#allocation8 + $0x38] sm:$0xf] %v548
    %565 = vst [vmem:[#allocation8 + $0x3c] sm:$0xf] %v549
    // Predicated region
    $region34: #{tpu_custom_call.1} parent=1 // pred_check
      _
    $region35: #{tpu_custom_call.1} parent=1 // pred_check_branch
      %567 = sbr.rel (0) target = $region37
    $region36: #{tpu_custom_call.1} parent=1 // pred_region
      %569 = vsyncadd [#allocation4], 0
      %s570 = sshll.u32 [#allocation8], 4
      %s571 = int_to_ptr.vmem [resolvable:$true] %s570
      %s572 = sshll.u32 %s5, 4
      %s573 = int_to_ptr.hbm [resolvable:$true] %s572
      %578 = dma.vmem_to_hbm [thread:$0]  %s571, 1024, %s573, [#allocation4], 64, 64, 4
    $region37: #{tpu_custom_call.1} parent=1 // pred_fallthru
      _
    // Predicated region
    $region38: #{tpu_custom_call.1} parent=1 // pred_check
      _
    $region39: #{tpu_custom_call.1} parent=1 // pred_check_branch
      %580 = sbr.rel (0) target = $region41
    $region40: #{tpu_custom_call.1} parent=1 // pred_region
      %582 = dma.done [#allocation4], 1024
    $region41: #{tpu_custom_call.1} parent=1 // pred_fallthru
      _
    %583 = vsyncpa [#allocation3], 1
    %584 = vsyncpa [#allocation6], 1
    %585 = vsyncpa [#allocation4], 1

</llo_original>
